<compile_context>
chip_gen: v6e
topology: v6e:2x2x1
jax: 0.10.0
libtpu: 0.0.40
codegen_flags: <defaults>
</compile_context>

<pallas_src>
import numpy as np
import jax
import jax.numpy as jnp
from jax.experimental import pallas as pl
from jax.experimental.pallas import tpu as pltpu


def _round_up(x, m):
    return ((x + m - 1) // m) * m


# keep the combined weight VMEM-resident unless it would crowd VMEM
_RESIDENT_WEIGHT_MAX_BYTES = 8 << 20


# ----------------------------------------------------------------------------
# Kernel: edge-parallel per-edge typed matmul  msg = x_src @ W[rel_of_tile]
# (x_src already carries the per-edge norm, folded in upstream in f32)
# ----------------------------------------------------------------------------
def _make_edge_msg_kernel(weight_resident):
    if weight_resident:
        def kernel(rel_ref, xs_ref, w_ref, msg_ref):
            r = rel_ref[pl.program_id(0)]          # SMEM scalar: relation of this tile
            w = w_ref[r]                           # (in_p, out_p) bf16, VMEM-resident slab
            msg_ref[...] = jnp.dot(
                xs_ref[...], w, preferred_element_type=jnp.float32
            ).astype(msg_ref.dtype)
    else:
        def kernel(rel_ref, xs_ref, w_ref, msg_ref):
            del rel_ref                            # consumed by the weight index_map
            msg_ref[...] = jnp.dot(
                xs_ref[...], w_ref[0], preferred_element_type=jnp.float32
            ).astype(msg_ref.dtype)
    return kernel


def edge_messages(rel_of_tile, x_src, weight, *, te):
    e_pad, in_p = x_src.shape
    num_rels, _, out_p = weight.shape
    num_tiles = e_pad // te

    w_bytes = num_rels * in_p * out_p * 2
    weight_resident = w_bytes <= _RESIDENT_WEIGHT_MAX_BYTES

    if weight_resident:
        # whole weight tensor resident in VMEM; block index never changes -> single DMA
        w_spec = pl.BlockSpec((num_rels, in_p, out_p), lambda t, rel: (0, 0, 0))
        w_foot = 2 * w_bytes
    else:
        # per-tile revisited block; a third buffer hides the weight DMA when relation
        # segments are only 1-2 tiles long
        w_spec = pl.BlockSpec((1, in_p, out_p), lambda t, rel: (rel[t], 0, 0),
                              pipeline_mode=pl.Buffered(3))
        w_foot = 3 * in_p * out_p * 2

    # actual footprint: double-buffered x and msg tiles (bf16) + weight slab
    footprint = 2 * te * in_p * 2 + 2 * te * out_p * 2 + w_foot
    vmem_limit = int(min(max(4 * footprint, 32 << 20), 48 << 20))

    return pl.pallas_call(
        _make_edge_msg_kernel(weight_resident),
        out_shape=jax.ShapeDtypeStruct((e_pad, out_p), jnp.bfloat16),
        grid_spec=pltpu.PrefetchScalarGridSpec(
            num_scalar_prefetch=1,
            grid=(num_tiles,),
            in_specs=[
                pl.BlockSpec((te, in_p), lambda t, rel: (t, 0)),
                w_spec,
            ],
            out_specs=pl.BlockSpec((te, out_p), lambda t, rel: (t, 0)),
        ),
        compiler_params=pltpu.CompilerParams(
            # TODO(synk): on v7x verify in xprof that both TensorCores split this axis;
            # if a single TC can't saturate ~3.2 TB/s, switch to pltpu.CORE_PARALLEL.
            dimension_semantics=("parallel",),
            vmem_limit_bytes=vmem_limit,
        ),
    )(rel_of_tile, x_src, weight)


# ----------------------------------------------------------------------------
# Model wrapper (glue in plain JAX / numpy: parameter combination, gather+norm fold,
# scatter-add aggregation over destination nodes, fused bias+ReLU epilogue)
# ----------------------------------------------------------------------------
def het_rgcn_single_layer_forward(params, graph, feats, edge_norm, *, te_max=1024):
    """params: dict(weight, w_comp|None, h_bias); graph: dict of numpy arrays
    (src, dst, etypes, num_nodes) with edges grouped by etype (separate-COO)."""
    weight = params["weight"]                                # (num_bases, in, out) f32
    num_bases, in_feat, out_feat = weight.shape
    w_comp = params["w_comp"]
    if w_comp is not None:                                   # basis regularizer
        num_rels = w_comp.shape[0]
        weight = jnp.matmul(
            w_comp, weight.reshape(num_bases, in_feat * out_feat)
        ).reshape(num_rels, in_feat, out_feat)
    else:
        num_rels = num_bases

    # lane-dense feature dims (multiples of 128); MXU in bf16, accumulate f32.
    in_p = _round_up(in_feat, 128)
    out_p = _round_up(out_feat, 128)
    weight_p = jnp.pad(
        weight, ((0, 0), (0, in_p - in_feat), (0, out_p - out_feat))
    ).astype(jnp.bfloat16)
    feats_p = jnp.pad(feats, ((0, 0), (0, in_p - in_feat)))   # f32 until norm is folded

    src = graph["src"]
    dst = graph["dst"]
    etypes = graph["etypes"]
    num_nodes = graph["num_nodes"]

    # --- edge tile: big, but clamped by median relation-segment length (padding waste) ---
    counts = np.bincount(np.asarray(etypes).astype(np.int64), minlength=num_rels)
    nz = counts[counts > 0]
    med = int(np.median(nz)) if nz.size else te_max
    te = int(max(128, min(te_max, _round_up(med, 128))))

    # --- static edge layout (host-side): group by relation, pad each segment to te ---
    # (assumes a static graph per compile; any change in etypes/E forces a retrace)
    perm_list, mask_list, rel_tiles = [], [], []
    for r in range(num_rels):
        idx = np.nonzero(etypes == r)[0]
        c = len(idx)
        if c == 0:
            continue
        p = _round_up(c, te)
        perm_list.append(np.concatenate([idx, np.zeros(p - c, dtype=np.int64)]))
        mask_list.append(
            np.concatenate([np.ones(c, np.float32), np.zeros(p - c, np.float32)])
        )
        rel_tiles.extend([r] * (p // te))
    edge_perm = np.concatenate(perm_list).astype(np.int32)
    valid = jnp.asarray(np.concatenate(mask_list))[:, None]   # (E_pad, 1)
    rel_of_tile = jnp.asarray(np.array(rel_tiles, dtype=np.int32))

    # gather (glue): per-edge norm (zeroed on padded edges) folded into the gather pass
    # in f32, single cast to bf16 for the MXU. Padded edges reuse edge 0's indices;
    # their rows are zeroed so their messages are exactly 0.
    # TODO(synk): fuse this row gather into the kernel (feats in pl.ANY + per-tile src
    # indices in SMEM + manual DMA double-buffer) to drop the E_pad x in_p HBM round trip.
    norm_p = edge_norm[jnp.asarray(edge_perm)] * valid                  # (E_pad, 1) f32
    x_src = (feats_p[jnp.asarray(src[edge_perm])] * norm_p).astype(jnp.bfloat16)
    dst_p = jnp.asarray(dst[edge_perm].astype(np.int32))

    # hot path: per-edge relation-typed matmul (Pallas, bf16 MXU / f32 acc, resident W)
    msgs = edge_messages(rel_of_tile, x_src, weight_p, te=te)  # (E_pad, out_p) bf16

    # destination scatter-add kept in XLA (data-dependent scatter). Padded output
    # columns are sliced off BEFORE the scatter; accumulation promoted back to f32.
    # TODO(synk): if num_nodes*out_p*4 fits VMEM, fuse this scatter-add + bias + ReLU
    # into the Pallas kernel with a VMEM-resident node accumulator (dst in SMEM).
    node_repr = jax.ops.segment_sum(
        msgs[:, :out_feat].astype(jnp.float32), dst_p, num_segments=num_nodes
    )

    # bias + ReLU fused into the XLA epilogue
    node_repr = jnp.maximum(node_repr + params["h_bias"][None, :], 0.0)
    # nn.Dropout(p=0.0) -> identity
    return node_repr


# ----------------------------------------------------------------------------
# Deterministic parameter init (matches module __init__ shapes)
# ----------------------------------------------------------------------------
def init_params(key, in_feat, out_feat, num_rels, num_bases):
    k1, k2 = jax.random.split(key)
    gain = float(np.sqrt(2.0))  # calculate_gain('relu')

    def xavier_uniform(k, shape, fan_in, fan_out):
        a = gain * np.sqrt(6.0 / (fan_in + fan_out))
        return jax.random.uniform(k, shape, jnp.float32, -a, a)

    weight = xavier_uniform(k1, (num_bases, in_feat, out_feat), in_feat, out_feat)
    if num_bases < num_rels:
        w_comp = xavier_uniform(k2, (num_rels, num_bases), num_bases, num_rels)
    else:
        w_comp = None
    h_bias = jnp.zeros((out_feat,), jnp.float32)
    return {"weight": weight, "w_comp": w_comp, "h_bias": h_bias}


if __name__ == "__main__":
    # small shapes (feature dims deliberately NOT multiples of 128 to exercise padding)
    N, E = 200, 1000
    in_feat, out_feat = 96, 192
    num_rels, num_bases = 6, 3

    key = jax.random.PRNGKey(0)
    kf, kn, kp = jax.random.split(key, 3)

    feats = jax.random.normal(kf, (N, in_feat), jnp.float32)
    edge_norm = jax.random.uniform(kn, (E, 1), jnp.float32, 0.1, 1.0)
    params = init_params(kp, in_feat, out_feat, num_rels, num_bases)

    # deterministic graph, edges grouped by relation (separate-COO)
    rng = np.random.RandomState(0)
    etypes = np.sort(rng.randint(0, num_rels, size=E)).astype(np.int64)
    src = rng.randint(0, N, size=E).astype(np.int64)
    dst = rng.randint(0, N, size=E).astype(np.int64)
    graph = {"src": src, "dst": dst, "etypes": etypes, "num_nodes": N}

    out = het_rgcn_single_layer_forward(params, graph, feats, edge_norm)
    out = jax.block_until_ready(out)

    # reference mirroring the kernel's numerics:
    # norm folded into gather in f32 -> bf16 LHS -> bf16 W, f32 accumulate -> bf16 msgs
    w_full = jnp.matmul(
        params["w_comp"], params["weight"].reshape(num_bases, -1)
    ).reshape(num_rels, in_feat, out_feat)
    w16 = w_full.astype(jnp.bfloat16)
    lhs = (feats[jnp.asarray(src)] * edge_norm).astype(jnp.bfloat16).astype(jnp.float32)
    msg_ref = jnp.einsum(
        "ei,eio->eo", lhs, w16[jnp.asarray(etypes)].astype(jnp.float32)
    )
    msg_ref = msg_ref.astype(jnp.bfloat16).astype(jnp.float32)  # kernel emits bf16 msgs
    ref = jax.ops.segment_sum(msg_ref, jnp.asarray(dst, dtype=jnp.int32), num_segments=N)
    ref = jnp.maximum(ref + params["h_bias"][None, :], 0.0)

    np.testing.assert_allclose(np.asarray(out), np.asarray(ref), rtol=2e-2, atol=2e-2)
    print("KERNEL_OK")
</pallas_src>

<mosaic_0001>
module attributes {stable_mosaic.version = 11 : i64} {
  func.func @kernel(%arg0: i32, %arg1: memref<6xi32, #tpu.memory_space<smem>>, %arg2: memref<256x128xbf16, #tpu.memory_space<vmem>>, %arg3: memref<6x128x256xbf16, #tpu.memory_space<vmem>>, %arg4: memref<256x256xbf16, #tpu.memory_space<vmem>>) attributes {dimension_semantics = [#tpu.dimension_semantics<parallel>], iteration_bounds = array<i64: 6>, scalar_prefetch = 1 : i64, scratch_operands = 0 : i64, tpu.core_type = #tpu.core_type<tc>, window_params = [{transform_indices = @transform_0, window_bounds = array<i64: 256, 128>}, {pipeline_mode = #tpu.pipeline_mode<synchronous>, transform_indices = @transform_1, window_bounds = array<i64: 6, 128, 256>}, {transform_indices = @transform_2, window_bounds = array<i64: 256, 256>}]} {
    %0 = arith.index_cast %arg0 : i32 to index
    %1 = memref.load %arg1[%0] : memref<6xi32, #tpu.memory_space<smem>>
    %2 = arith.index_cast %1 : i32 to index
    %c0 = arith.constant 0 : index
    %c0_0 = arith.constant 0 : index
    %3 = vector.load %arg3[%2, %c0, %c0_0] : memref<6x128x256xbf16, #tpu.memory_space<vmem>>, vector<1x128x256xbf16>
    %4 = vector.shape_cast %3 : vector<1x128x256xbf16> to vector<128x256xbf16>
    %c0_1 = arith.constant 0 : index
    %c0_2 = arith.constant 0 : index
    %5 = vector.load %arg2[%c0_1, %c0_2] : memref<256x128xbf16, #tpu.memory_space<vmem>>, vector<256x128xbf16>
    %cst = arith.constant dense<0.000000e+00> : vector<256x256xf32>
    %6 = tpu.matmul %5, %4, %cst {dimension_numbers = #tpu.dot_dimension_numbers<[1], [0], [0], [1], [0, 0, 1, 1], [], []>} : vector<256x128xbf16>, vector<128x256xbf16>, vector<256x256xf32> -> vector<256x256xf32>
    %7 = arith.truncf %6 : vector<256x256xf32> to vector<256x256xbf16>
    %c0_3 = arith.constant 0 : index
    %c0_4 = arith.constant 0 : index
    %8 = vector.load %arg4[%c0_3, %c0_4] : memref<256x256xbf16, #tpu.memory_space<vmem>>, vector<256x256xbf16>
    tpu.vector_store %arg4[%c0_3, %c0_4], %7 {strides = array<i32>} : memref<256x256xbf16, #tpu.memory_space<vmem>>, vector<256x256xbf16>,
    return
  }
  func.func @transform_0(%arg0: i32, %arg1: memref<6xi32, #tpu.memory_space<smem>>) -> (i32, i32) {
    %c0_i32 = arith.constant 0 : i32
    %c0_i32_0 = arith.constant 0 : i32
    return %arg0, %c0_i32 : i32, i32
  }
  func.func @transform_1(%arg0: i32, %arg1: memref<6xi32, #tpu.memory_space<smem>>) -> (i32, i32, i32) {
    %c0_i32 = arith.constant 0 : i32
    %c0_i32_0 = arith.constant 0 : i32
    %c0_i32_1 = arith.constant 0 : i32
    %c0_i32_2 = arith.constant 0 : i32
    return %c0_i32, %c0_i32_0, %c0_i32_1 : i32, i32, i32
  }
  func.func @transform_2(%arg0: i32, %arg1: memref<6xi32, #tpu.memory_space<smem>>) -> (i32, i32) {
    %c0_i32 = arith.constant 0 : i32
    %c0_i32_0 = arith.constant 0 : i32
    return %arg0, %c0_i32 : i32, i32
  }
}

</mosaic_0001>

<llo_original>
// kernel: tpu_custom_call.1
$region0: #{tpu_custom_call.1}
  #allocation0 [shape = 'u32[]', space=smem, size = 0x4, offset = 0x4, fixed_abs, tag = 'smem constant byte address 0x4 - core index']
  #allocation1 [shape = 'u32[144,128]{1,0:T(1,128)}', space=vmem, size = 0x12000, scoped, tag = 'internal scratch']
  #allocation2 [shape = 's32[1]{0}', space=sflag, size = 0x4, scoped, tag = 'scoped memory for tpu_custom_call.1']
  #allocation3 [shape = 'u8[512]{0}', space=smem, size = 0x200, scoped, tag = 'prefetched SMEM operand 0']
  %s0 = inlined_call_operand.hbm [shape: s32[6], index: 0, kind: input, shape index: {}]
  %s1 = inlined_call_operand.hbm [shape: bf16[1536,128], index: 1, kind: input, shape index: {}]
  %s2 = inlined_call_operand.hbm [shape: bf16[6,128,256], index: 2, kind: input, shape index: {}]
  %s3 = inlined_call_operand.hbm [shape: bf16[1536,256], index: 3, kind: output, shape index: {}]
  %s4 = sld [smem:[#allocation0]]
  $region49: #{tpu_custom_call.1} parent=0
    _
  %s6 = ssub.s32 1, %s4
  %s7 = scalar_select 0, %s6, %s4
  %9 = dma.hbm_to_smem %s0, 16, [#allocation3], [#allocation2]
  %10 = dma.done [#allocation2], 16
  %11 = sfence
  $region1: #{tpu_custom_call.1} parent=0
    #allocation4 [shape = 'u8[131072]{0}', space=vmem, size = 0x20000, scoped, tag = 'input window, operand 1']
    #allocation5 [shape = 's32[2]{0}', space=sflag, size = 0x8, scoped, tag = 'scoped memory for tpu_custom_call.1']
    #allocation6 [shape = 's32[2]{0}', space=sflag, size = 0x8, scoped, tag = 'scoped memory for tpu_custom_call.1']
    #allocation7 [shape = 'u8[393216]{0}', space=vmem, size = 0x60000, scoped, tag = 'input window, operand 2, single buffered']
    #allocation8 [shape = 's32[1]{0}', space=sflag, size = 0x4, scoped, tag = 'scoped memory for tpu_custom_call.1']
    #allocation9 [shape = 'u8[262144]{0}', space=vmem, size = 0x40000, scoped, tag = 'output window, operand 0']
    %12 = vsyncpa [#allocation5], 0
    %s13 = scalar_lea.sflag [#allocation5], 1
    %14 = vsyncpa %s13, 0
    %15 = vsyncpa [#allocation8], 0
    %16 = vsyncpa [#allocation6], 0
    %s17 = scalar_lea.sflag [#allocation6], 1
    %18 = vsyncpa %s17, 0
    loop: start=0, step=1, limit=8
    $region2: #{tpu_custom_call.1} parent=1 // loop_pre_header
      _
    $region3: #{tpu_custom_call.1} parent=1 // loop_header
      %s20 = sphi 0, %s24
      %p21 = scmp.ge.s32.totalorder %s20, 8
      %s30 = sphi 0, %s32
      %s33 = sphi 0, %s30
      %s34 = sphi 0, %s33
      %s50 = sphi 0, %s34
      %s54 = sphi 0, %s54
      %s56 = sphi 0, %s54
      %s57 = sphi 0, %s56
      %s71 = sphi 0, %s57
      %s77 = sphi 0, %s79
      %s80 = sphi 0, %s77
      %s81 = sphi 0, %s80
      %s97 = sphi 0, %s81
    $region4: #{tpu_custom_call.1} parent=1 // loop_header_branch
      %23 = sbr.rel (%p21) target = $region8
    $region5: #{tpu_custom_call.1} parent=1 // loop_body
      %s25 = ssub.s32 %s20, 1
      %s26 = ssub.s32 %s20, 2
      %s27 = sadd.s32 %s20, 1
      %s28 = ssub.s32 %s20, %s27
      %p29 = scmp.eq.s32.totalorder %s28, 0
      %s31 = sadd.s32 %s30, 1
      %s32 = scalar_select %p29, %s30, %s31
      %p35 = pneg %p29
      %p36 = scmp.eq.s32.totalorder %s20, 5
      %p37 = por %p35, %p36
      %p38 = scmp.ne.s32.totalorder %s30, %s33
      %p39 = scmp.eq.s32.totalorder %s20, 0
      %p40 = por %p38, %p39
      %p41 = scmp.ne.s32.totalorder %s30, %s33
      %p42 = scmp.eq.s32.totalorder %s25, 5
      %p43 = por %p41, %p42
      %p44 = scmp.ne.s32.totalorder %s33, %s34
      %p45 = scmp.eq.s32.totalorder %s25, 0
      %p46 = por %p44, %p45
      %p47 = scmp.ne.s32.totalorder %s33, %s34
      %p48 = scmp.eq.s32.totalorder %s26, 5
      %p49 = por %p47, %p48
      %p51 = scmp.ne.s32.totalorder %s34, %s50
      %p52 = scmp.eq.s32.totalorder %s26, 0
      %p53 = por %p51, %p52
      %s55 = sadd.s32 %s54, 1
      %p58 = scmp.eq.s32.totalorder %s20, 5
      %p59 = scmp.ne.s32.totalorder %s54, %s56
      %p60 = scmp.eq.s32.totalorder %s20, 0
      %p61 = por %p59, %p60
      %p62 = scmp.ne.s32.totalorder %s54, %s56
      %p63 = scmp.eq.s32.totalorder %s25, 5
      %p64 = por %p62, %p63
      %p65 = scmp.ne.s32.totalorder %s56, %s57
      %p66 = scmp.eq.s32.totalorder %s25, 0
      %p67 = por %p65, %p66
      %p68 = scmp.ne.s32.totalorder %s56, %s57
      %p69 = scmp.eq.s32.totalorder %s26, 5
      %p70 = por %p68, %p69
      %p72 = scmp.ne.s32.totalorder %s57, %s71
      %p73 = scmp.eq.s32.totalorder %s26, 0
      %p74 = por %p72, %p73
      %s75 = ssub.s32 %s20, %s27
      %p76 = scmp.eq.s32.totalorder %s75, 0
      %s78 = sadd.s32 %s77, 1
      %s79 = scalar_select %p76, %s77, %s78
      %p82 = pneg %p76
      %p83 = scmp.eq.s32.totalorder %s20, 5
      %p84 = por %p82, %p83
      %p85 = scmp.ne.s32.totalorder %s77, %s80
      %p86 = scmp.eq.s32.totalorder %s20, 0
      %p87 = por %p85, %p86
      %p88 = scmp.ne.s32.totalorder %s77, %s80
      %p89 = scmp.eq.s32.totalorder %s25, 5
      %p90 = por %p88, %p89
      %p91 = scmp.ne.s32.totalorder %s80, %s81
      %p92 = scmp.eq.s32.totalorder %s25, 0
      %p93 = por %p91, %p92
      %p94 = scmp.ne.s32.totalorder %s80, %s81
      %p95 = scmp.eq.s32.totalorder %s26, 5
      %p96 = por %p94, %p95
      %p98 = scmp.ne.s32.totalorder %s81, %s97
      %p99 = scmp.eq.s32.totalorder %s26, 0
      %p100 = por %p98, %p99
      %p101 = scmp.le.s32.totalorder 1, %s20
      %p102 = scmp.lt.s32.totalorder %s20, 7
      %p103 = pnand %p101, %p102
      %p104 = pneg %p103
      // Predicated region
      $region9: #{tpu_custom_call.1} parent=5 // pred_check
        _
      $region10: #{tpu_custom_call.1} parent=5 // pred_check_branch
        %106 = sbr.rel (%p103) target = $region12
      $region11: #{tpu_custom_call.1} parent=5 // pred_region
        %s107 = ssub.s32 %s20, 1
        // Predicated region
        $region13: #{tpu_custom_call.1} parent=11 // pred_check
          %p108 = pneg %p67
        $region14: #{tpu_custom_call.1} parent=11 // pred_check_branch
          %110 = sbr.rel (%p108) target = $region16
        $region15: #{tpu_custom_call.1} parent=11 // pred_region
          %s112 = ssub.s32 12288, 12288
          %113 = vsyncadd [#allocation8], %s112
          %s114 = sshll.u32 [#allocation7], 4
          %s115 = int_to_ptr.vmem [resolvable:$true] %s114
          %120 = dma.hbm_to_vmem [thread:$0]  %s2, 12288, %s115, [#allocation8], 128, 128, 8
        $region16: #{tpu_custom_call.1} parent=11 // pred_fallthru
          _
      $region12: #{tpu_custom_call.1} parent=5 // pred_fallthru
        _
      %p121 = scmp.lt.s32.totalorder %s20, 6
      // Predicated region
      $region17: #{tpu_custom_call.1} parent=5 // pred_check
        %p122 = pneg %p121
      $region18: #{tpu_custom_call.1} parent=5 // pred_check_branch
        %124 = sbr.rel (%p122) target = $region20
      $region19: #{tpu_custom_call.1} parent=5 // pred_region
        // Predicated region
        $region21: #{tpu_custom_call.1} parent=19 // pred_check
          %p125 = pneg %p40
        $region22: #{tpu_custom_call.1} parent=19 // pred_check_branch
          %127 = sbr.rel (%p125) target = $region24
        $region23: #{tpu_custom_call.1} parent=19 // pred_region
          %s128 = sand.u32 %s30, 1
          %s129 = scalar_lea.sflag [#allocation5], %s128
          %s130 = sand.u32 %s30, 1
          %s131 = smul.addr %s130, 128
          %s132 = scalar_lea.vmem [#allocation4], %s131
          %s133 = smul.u32 32, %s20
          %s135 = ssub.s32 2048, 2048
          %136 = vsyncadd %s129, %s135
          %s137 = smul.addr %s133, 64
          %s138 = scalar_lea.hbm %s1, %s137
          %s139 = sshll.u32 %s132, 4
          %s140 = int_to_ptr.vmem [resolvable:$true] %s139
          %145 = dma.hbm_to_vmem [thread:$0]  %s138, 2048, %s140, %s129, 64, 64, 4
        $region24: #{tpu_custom_call.1} parent=19 // pred_fallthru
          _
      $region20: #{tpu_custom_call.1} parent=5 // pred_fallthru
        _
      %p146 = scmp.le.s32.totalorder 1, %s20
      %p147 = scmp.lt.s32.totalorder %s20, 7
      %p148 = pnand %p146, %p147
      %p149 = pneg %p148
      // Predicated region
      $region25: #{tpu_custom_call.1} parent=5 // pred_check
        _
      $region26: #{tpu_custom_call.1} parent=5 // pred_check_branch
        %151 = sbr.rel (%p148) target = $region28
      $region27: #{tpu_custom_call.1} parent=5 // pred_region
        %s152 = ssub.s32 %s20, 1
        %s153 = sand.u32 %s33, 1
        %s154 = scalar_lea.sflag [#allocation5], %s153
        %s155 = sand.u32 %s33, 1
        %s156 = smul.addr %s155, 128
        %s157 = scalar_lea.vmem [#allocation4], %s156
        // Predicated region
        $region29: #{tpu_custom_call.1} parent=27 // pred_check
          %p158 = pneg %p46
        $region30: #{tpu_custom_call.1} parent=27 // pred_check_branch
          %160 = sbr.rel (%p158) target = $region32
        $region31: #{tpu_custom_call.1} parent=27 // pred_region
          %161 = dma.done %s154, 2048
        $region32: #{tpu_custom_call.1} parent=27 // pred_fallthru
          _
        // Predicated region
        $region33: #{tpu_custom_call.1} parent=27 // pred_check
          %p162 = pneg %p67
        $region34: #{tpu_custom_call.1} parent=27 // pred_check_branch
          %164 = sbr.rel (%p162) target = $region36
        $region35: #{tpu_custom_call.1} parent=27 // pred_region
          %165 = dma.done [#allocation8], 12288
        $region36: #{tpu_custom_call.1} parent=27 // pred_fallthru
          _
        %s166 = sand.u32 %s33, 1
        %s167 = scalar_lea.sflag [#allocation5], %s166
        %s168 = sand.u32 %s33, 1
        %s169 = smul.addr %s168, 128
        %s170 = scalar_lea.vmem [#allocation4], %s169
        %p171 = pneg %p46
        %p172 = pneg %p43
        %p173 = pneg %p67
        %p174 = pneg %p64
        %p175 = pneg %p93
        %p176 = pneg %p90
        %s177 = sand.u32 %s80, 1
        %s178 = scalar_lea.sflag [#allocation6], %s177
        %s179 = sand.u32 %s80, 1
        %s180 = smul.addr %s179, 256
        %s181 = scalar_lea.vmem [#allocation9], %s180
        %s182 = smul.u32 32, %s25
        %s183 = smul.u32 32, %s25
        %s185 = sld [smem:[#allocation3 + %s25]]
        %s186 = smul.u32 %s185, 32
        %s187 = smul.addr %s186, 4
        %s188 = scalar_lea.vmem [#allocation7], %s187
        %v189 = vld [vmem:[%s188] sm:$0xff]
        %v190 = vld [vmem:[%s188 + $0x8] sm:$0xff]
        %v191 = vld [vmem:[%s188 + $0x10] sm:$0xff]
        %v192 = vld [vmem:[%s188 + $0x18] sm:$0xff]
        %v193 = vld [vmem:[%s188 + $0x20] sm:$0xff]
        %v194 = vld [vmem:[%s188 + $0x28] sm:$0xff]
        %v195 = vld [vmem:[%s188 + $0x30] sm:$0xff]
        %v196 = vld [vmem:[%s188 + $0x38] sm:$0xff]
        %v197 = vld [vmem:[%s188 + $0x40] sm:$0xff]
        %v198 = vld [vmem:[%s188 + $0x48] sm:$0xff]
        %v199 = vld [vmem:[%s188 + $0x50] sm:$0xff]
        %v200 = vld [vmem:[%s188 + $0x58] sm:$0xff]
        %v201 = vld [vmem:[%s188 + $0x60] sm:$0xff]
        %v202 = vld [vmem:[%s188 + $0x68] sm:$0xff]
        %v203 = vld [vmem:[%s188 + $0x70] sm:$0xff]
        %v204 = vld [vmem:[%s188 + $0x78] sm:$0xff]
        %v205 = vld [vmem:[%s157] sm:$0xf]
        %v206 = vld [vmem:[%s157 + $0x4] sm:$0xf]
        %v207 = vld [vmem:[%s157 + $0x8] sm:$0xf]
        %v208 = vld [vmem:[%s157 + $0xc] sm:$0xf]
        %v209 = vld [vmem:[%s157 + $0x10] sm:$0xf]
        %v210 = vld [vmem:[%s157 + $0x14] sm:$0xf]
        %v211 = vld [vmem:[%s157 + $0x18] sm:$0xf]
        %v212 = vld [vmem:[%s157 + $0x1c] sm:$0xf]
        %v213 = vld [vmem:[%s157 + $0x20] sm:$0xf]
        %v214 = vld [vmem:[%s157 + $0x24] sm:$0xf]
        %v215 = vld [vmem:[%s157 + $0x28] sm:$0xf]
        %v216 = vld [vmem:[%s157 + $0x2c] sm:$0xf]
        %v217 = vld [vmem:[%s157 + $0x30] sm:$0xf]
        %v218 = vld [vmem:[%s157 + $0x34] sm:$0xf]
        %v219 = vld [vmem:[%s157 + $0x38] sm:$0xf]
        %v220 = vld [vmem:[%s157 + $0x3c] sm:$0xf]
        %v221 = vld [vmem:[%s157 + $0x40] sm:$0xf]
        %v222 = vld [vmem:[%s157 + $0x44] sm:$0xf]
        %v223 = vld [vmem:[%s157 + $0x48] sm:$0xf]
        %v224 = vld [vmem:[%s157 + $0x4c] sm:$0xf]
        %v225 = vld [vmem:[%s157 + $0x50] sm:$0xf]
        %v226 = vld [vmem:[%s157 + $0x54] sm:$0xf]
        %v227 = vld [vmem:[%s157 + $0x58] sm:$0xf]
        %v228 = vld [vmem:[%s157 + $0x5c] sm:$0xf]
        %v229 = vld [vmem:[%s157 + $0x60] sm:$0xf]
        %v230 = vld [vmem:[%s157 + $0x64] sm:$0xf]
        %v231 = vld [vmem:[%s157 + $0x68] sm:$0xf]
        %v232 = vld [vmem:[%s157 + $0x6c] sm:$0xf]
        %v233 = vld [vmem:[%s157 + $0x70] sm:$0xf]
        %v234 = vld [vmem:[%s157 + $0x74] sm:$0xf]
        %v235 = vld [vmem:[%s157 + $0x78] sm:$0xf]
        %v236 = vld [vmem:[%s157 + $0x7c] sm:$0xf]
        %v269 = vunpack.c.l.b16 %v205
        %v270 = vunpack.c.l.b16 %v206
        %v271 = vunpack.c.l.b16 %v207
        %v272 = vunpack.c.l.b16 %v208
        %v273 = vunpack.c.l.b16 %v209
        %v274 = vunpack.c.l.b16 %v210
        %v275 = vunpack.c.l.b16 %v211
        %v276 = vunpack.c.l.b16 %v212
        %v277 = vunpack.c.l.b16 %v213
        %v278 = vunpack.c.l.b16 %v214
        %v279 = vunpack.c.l.b16 %v215
        %v280 = vunpack.c.l.b16 %v216
        %v281 = vunpack.c.l.b16 %v217
        %v282 = vunpack.c.l.b16 %v218
        %v283 = vunpack.c.l.b16 %v219
        %v284 = vunpack.c.l.b16 %v220
        %v285 = vunpack.c.l.b16 %v221
        %v286 = vunpack.c.l.b16 %v222
        %v287 = vunpack.c.l.b16 %v223
        %v288 = vunpack.c.l.b16 %v224
        %v289 = vunpack.c.l.b16 %v225
        %v290 = vunpack.c.l.b16 %v226
        %v291 = vunpack.c.l.b16 %v227
        %v292 = vunpack.c.l.b16 %v228
        %v293 = vunpack.c.l.b16 %v229
        %v294 = vunpack.c.l.b16 %v230
        %v295 = vunpack.c.l.b16 %v231
        %v296 = vunpack.c.l.b16 %v232
        %v297 = vunpack.c.l.b16 %v233
        %v298 = vunpack.c.l.b16 %v234
        %v299 = vunpack.c.l.b16 %v235
        %v300 = vunpack.c.l.b16 %v236
        %v301 = vpack.c.b16 %v270, %v269
        %v302 = vpack.c.b16 %v272, %v271
        %v303 = vpack.c.b16 %v274, %v273
        %v304 = vpack.c.b16 %v276, %v275
        %v305 = vpack.c.b16 %v278, %v277
        %v306 = vpack.c.b16 %v280, %v279
        %v307 = vpack.c.b16 %v282, %v281
        %v308 = vpack.c.b16 %v284, %v283
        %v309 = vpack.c.b16 %v286, %v285
        %v310 = vpack.c.b16 %v288, %v287
        %v311 = vpack.c.b16 %v290, %v289
        %v312 = vpack.c.b16 %v292, %v291
        %v313 = vpack.c.b16 %v294, %v293
        %v314 = vpack.c.b16 %v296, %v295
        %v315 = vpack.c.b16 %v298, %v297
        %v316 = vpack.c.b16 %v300, %v299
        %v349 = vunpack.c.l.b16 %v189
        %v350 = vunpack.c.h.b16 %v189
        %v351 = vunpack.c.l.b16 %v190
        %v352 = vunpack.c.h.b16 %v190
        %v353 = vunpack.c.l.b16 %v191
        %v354 = vunpack.c.h.b16 %v191
        %v355 = vunpack.c.l.b16 %v192
        %v356 = vunpack.c.h.b16 %v192
        %v357 = vunpack.c.l.b16 %v193
        %v358 = vunpack.c.h.b16 %v193
        %v359 = vunpack.c.l.b16 %v194
        %v360 = vunpack.c.h.b16 %v194
        %v361 = vunpack.c.l.b16 %v195
        %v362 = vunpack.c.h.b16 %v195
        %v363 = vunpack.c.l.b16 %v196
        %v364 = vunpack.c.h.b16 %v196
        %v365 = vunpack.c.l.b16 %v197
        %v366 = vunpack.c.h.b16 %v197
        %v367 = vunpack.c.l.b16 %v198
        %v368 = vunpack.c.h.b16 %v198
        %v369 = vunpack.c.l.b16 %v199
        %v370 = vunpack.c.h.b16 %v199
        %v371 = vunpack.c.l.b16 %v200
        %v372 = vunpack.c.h.b16 %v200
        %v373 = vunpack.c.l.b16 %v201
        %v374 = vunpack.c.h.b16 %v201
        %v375 = vunpack.c.l.b16 %v202
        %v376 = vunpack.c.h.b16 %v202
        %v377 = vunpack.c.l.b16 %v203
        %v378 = vunpack.c.h.b16 %v203
        %v379 = vunpack.c.l.b16 %v204
        %v380 = vunpack.c.h.b16 %v204
        %v381 = vpack.c.b16 %v351, %v349
        %v382 = vpack.c.b16 %v352, %v350
        %v383 = vpack.c.b16 %v355, %v353
        %v384 = vpack.c.b16 %v356, %v354
        %v385 = vpack.c.b16 %v359, %v357
        %v386 = vpack.c.b16 %v360, %v358
        %v387 = vpack.c.b16 %v363, %v361
        %v388 = vpack.c.b16 %v364, %v362
        %v389 = vpack.c.b16 %v367, %v365
        %v390 = vpack.c.b16 %v368, %v366
        %v391 = vpack.c.b16 %v371, %v369
        %v392 = vpack.c.b16 %v372, %v370
        %v393 = vpack.c.b16 %v375, %v373
        %v394 = vpack.c.b16 %v376, %v374
        %v395 = vpack.c.b16 %v379, %v377
        %v396 = vpack.c.b16 %v380, %v378
        %413 = vmatprep.subr.bf16.mxu0 %v396
        %414 = vmatpush1.bf16.msra.mxu0 %v395
        %415 = vmatprep.subr.bf16.mxu0 %v394
        %416 = vmatpush1.bf16.msra.mxu0 %v393
        %417 = vmatprep.subr.bf16.mxu0 %v392
        %418 = vmatpush1.bf16.msra.mxu0 %v391
        %419 = vmatprep.subr.bf16.mxu0 %v390
        %420 = vmatpush1.bf16.msra.mxu0 %v389
        %421 = vmatprep.subr.bf16.mxu0 %v388
        %422 = vmatpush1.bf16.msra.mxu0 %v387
        %423 = vmatprep.subr.bf16.mxu0 %v386
        %424 = vmatpush1.bf16.msra.mxu0 %v385
        %425 = vmatprep.subr.bf16.mxu0 %v384
        %426 = vmatpush1.bf16.msra.mxu0 %v383
        %427 = vmatprep.subr.bf16.mxu0 %v382
        %428 = vmatpush1.bf16.msra.mxu0 %v381
        %429 = vmatprep.subr.bf16.mxu0 0
        %430 = vmatpush2.bf16.msra.mxu0 0
        %431 = vmatprep.subr.bf16.mxu0 0
        %432 = vmatpush2.bf16.msra.mxu0 0
        %433 = vmatprep.subr.bf16.mxu0 0
        %434 = vmatpush2.bf16.msra.mxu0 0
        %435 = vmatprep.subr.bf16.mxu0 0
        %436 = vmatpush2.bf16.msra.mxu0 0
        %437 = vmatprep.subr.bf16.mxu0 0
        %438 = vmatpush2.bf16.msra.mxu0 0
        %439 = vmatprep.subr.bf16.mxu0 0
        %440 = vmatpush2.bf16.msra.mxu0 0
        %441 = vmatprep.subr.bf16.mxu0 0
        %442 = vmatpush2.bf16.msra.mxu0 0
        %443 = vmatprep.subr.bf16.mxu0 0
        %444 = vmatpush2.bf16.msra.mxu0 0
        %445 = vmatprep.mubr.bf16.mxu0 0
        %446 = vmatmul.mubr.bf16.gmra.mxu0 %v301
        %v447 = vpop.f32.mrf.mxu0
        %v448 = vadd.f32 0.0, %v447
        %v449 = vpop.f32.mrf.mxu0
        %v450 = vadd.f32 0.0, %v449
        %v451 = vpop.f32.mrf.mxu0
        %v452 = vadd.f32 0.0, %v451
        %v453 = vpop.f32.mrf.mxu0
        %v454 = vadd.f32 0.0, %v453
        %455 = vmatprep.mubr.bf16.mxu0 0
        %456 = vmatmul.mubr.bf16.gmra.mxu0 %v302
        %v457 = vpop.f32.mrf.mxu0
        %v458 = vadd.f32 0.0, %v457
        %v459 = vpop.f32.mrf.mxu0
        %v460 = vadd.f32 0.0, %v459
        %v461 = vpop.f32.mrf.mxu0
        %v462 = vadd.f32 0.0, %v461
        %v463 = vpop.f32.mrf.mxu0
        %v464 = vadd.f32 0.0, %v463
        %465 = vmatprep.mubr.bf16.mxu0 0
        %466 = vmatmul.mubr.bf16.gmra.mxu0 %v303
        %v467 = vpop.f32.mrf.mxu0
        %v468 = vadd.f32 0.0, %v467
        %v469 = vpop.f32.mrf.mxu0
        %v470 = vadd.f32 0.0, %v469
        %v471 = vpop.f32.mrf.mxu0
        %v472 = vadd.f32 0.0, %v471
        %v473 = vpop.f32.mrf.mxu0
        %v474 = vadd.f32 0.0, %v473
        %475 = vmatprep.mubr.bf16.mxu0 0
        %476 = vmatmul.mubr.bf16.gmra.mxu0 %v304
        %v477 = vpop.f32.mrf.mxu0
        %v478 = vadd.f32 0.0, %v477
        %v479 = vpop.f32.mrf.mxu0
        %v480 = vadd.f32 0.0, %v479
        %v481 = vpop.f32.mrf.mxu0
        %v482 = vadd.f32 0.0, %v481
        %v483 = vpop.f32.mrf.mxu0
        %v484 = vadd.f32 0.0, %v483
        %485 = vmatprep.mubr.bf16.mxu0 0
        %486 = vmatmul.mubr.bf16.gmra.mxu0 %v305
        %v487 = vpop.f32.mrf.mxu0
        %v488 = vadd.f32 0.0, %v487
        %v489 = vpop.f32.mrf.mxu0
        %v490 = vadd.f32 0.0, %v489
        %v491 = vpop.f32.mrf.mxu0
        %v492 = vadd.f32 0.0, %v491
        %v493 = vpop.f32.mrf.mxu0
        %v494 = vadd.f32 0.0, %v493
        %495 = vmatprep.mubr.bf16.mxu0 0
        %496 = vmatmul.mubr.bf16.gmra.mxu0 %v306
        %v497 = vpop.f32.mrf.mxu0
        %v498 = vadd.f32 0.0, %v497
        %v499 = vpop.f32.mrf.mxu0
        %v500 = vadd.f32 0.0, %v499
        %v501 = vpop.f32.mrf.mxu0
        %v502 = vadd.f32 0.0, %v501
        %v503 = vpop.f32.mrf.mxu0
        %v504 = vadd.f32 0.0, %v503
        %505 = vmatprep.mubr.bf16.mxu0 0
        %506 = vmatmul.mubr.bf16.gmra.mxu0 %v307
        %v507 = vpop.f32.mrf.mxu0
        %v508 = vadd.f32 0.0, %v507
        %v509 = vpop.f32.mrf.mxu0
        %v510 = vadd.f32 0.0, %v509
        %v511 = vpop.f32.mrf.mxu0
        %v512 = vadd.f32 0.0, %v511
        %v513 = vpop.f32.mrf.mxu0
        %v514 = vadd.f32 0.0, %v513
        %515 = vmatprep.mubr.bf16.mxu0 0
        %516 = vmatmul.mubr.bf16.gmra.mxu0 %v308
        %v517 = vpop.f32.mrf.mxu0
        %v518 = vadd.f32 0.0, %v517
        %v519 = vpop.f32.mrf.mxu0
        %v520 = vadd.f32 0.0, %v519
        %v521 = vpop.f32.mrf.mxu0
        %v522 = vadd.f32 0.0, %v521
        %v523 = vpop.f32.mrf.mxu0
        %v524 = vadd.f32 0.0, %v523
        %525 = vmatprep.mubr.bf16.mxu0 0
        %526 = vmatmul.mubr.bf16.gmra.mxu0 %v309
        %v527 = vpop.f32.mrf.mxu0
        %v528 = vadd.f32 0.0, %v527
        %v529 = vpop.f32.mrf.mxu0
        %v530 = vadd.f32 0.0, %v529
        %v531 = vpop.f32.mrf.mxu0
        %v532 = vadd.f32 0.0, %v531
        %v533 = vpop.f32.mrf.mxu0
        %v534 = vadd.f32 0.0, %v533
        %535 = vmatprep.mubr.bf16.mxu0 0
        %536 = vmatmul.mubr.bf16.gmra.mxu0 %v310
        %v537 = vpop.f32.mrf.mxu0
        %v538 = vadd.f32 0.0, %v537
        %v539 = vpop.f32.mrf.mxu0
        %v540 = vadd.f32 0.0, %v539
        %v541 = vpop.f32.mrf.mxu0
        %v542 = vadd.f32 0.0, %v541
        %v543 = vpop.f32.mrf.mxu0
        %v544 = vadd.f32 0.0, %v543
        %545 = vmatprep.mubr.bf16.mxu0 0
        %546 = vmatmul.mubr.bf16.gmra.mxu0 %v311
        %v547 = vpop.f32.mrf.mxu0
        %v548 = vadd.f32 0.0, %v547
        %v549 = vpop.f32.mrf.mxu0
        %v550 = vadd.f32 0.0, %v549
        %v551 = vpop.f32.mrf.mxu0
        %v552 = vadd.f32 0.0, %v551
        %v553 = vpop.f32.mrf.mxu0
        %v554 = vadd.f32 0.0, %v553
        %555 = vmatprep.mubr.bf16.mxu0 0
        %556 = vmatmul.mubr.bf16.gmra.mxu0 %v312
        %v557 = vpop.f32.mrf.mxu0
        %v558 = vadd.f32 0.0, %v557
        %v559 = vpop.f32.mrf.mxu0
        %v560 = vadd.f32 0.0, %v559
        %v561 = vpop.f32.mrf.mxu0
        %v562 = vadd.f32 0.0, %v561
        %v563 = vpop.f32.mrf.mxu0
        %v564 = vadd.f32 0.0, %v563
        %565 = vmatprep.mubr.bf16.mxu0 0
        %566 = vmatmul.mubr.bf16.gmra.mxu0 %v313
        %v567 = vpop.f32.mrf.mxu0
        %v568 = vadd.f32 0.0, %v567
        %v569 = vpop.f32.mrf.mxu0
        %v570 = vadd.f32 0.0, %v569
        %v571 = vpop.f32.mrf.mxu0
        %v572 = vadd.f32 0.0, %v571
        %v573 = vpop.f32.mrf.mxu0
        %v574 = vadd.f32 0.0, %v573
        %575 = vmatprep.mubr.bf16.mxu0 0
        %576 = vmatmul.mubr.bf16.gmra.mxu0 %v314
        %v577 = vpop.f32.mrf.mxu0
        %v578 = vadd.f32 0.0, %v577
        %v579 = vpop.f32.mrf.mxu0
        %v580 = vadd.f32 0.0, %v579
        %v581 = vpop.f32.mrf.mxu0
        %v582 = vadd.f32 0.0, %v581
        %v583 = vpop.f32.mrf.mxu0
        %v584 = vadd.f32 0.0, %v583
        %585 = vmatprep.mubr.bf16.mxu0 0
        %586 = vmatmul.mubr.bf16.gmra.mxu0 %v315
        %v587 = vpop.f32.mrf.mxu0
        %v588 = vadd.f32 0.0, %v587
        %v589 = vpop.f32.mrf.mxu0
        %v590 = vadd.f32 0.0, %v589
        %v591 = vpop.f32.mrf.mxu0
        %v592 = vadd.f32 0.0, %v591
        %v593 = vpop.f32.mrf.mxu0
        %v594 = vadd.f32 0.0, %v593
        %595 = vmatprep.mubr.bf16.mxu0 0
        %596 = vmatmul.mubr.bf16.gmra.mxu0 %v316
        %v597 = vpop.f32.mrf.mxu0
        %v598 = vadd.f32 0.0, %v597
        %v599 = vpop.f32.mrf.mxu0
        %v600 = vadd.f32 0.0, %v599
        %v601 = vpop.f32.mrf.mxu0
        %v602 = vadd.f32 0.0, %v601
        %v603 = vpop.f32.mrf.mxu0
        %v604 = vadd.f32 0.0, %v603
        %605 = vdwg.mxu0
        %v606 = vpack.c.bf16 %v452, %v448
        %v607 = vpack.c.bf16 %v454, %v450
        %v608 = vpack.c.bf16 %v462, %v458
        %v609 = vpack.c.bf16 %v464, %v460
        %v610 = vpack.c.bf16 %v472, %v468
        %v611 = vpack.c.bf16 %v474, %v470
        %v612 = vpack.c.bf16 %v482, %v478
        %v613 = vpack.c.bf16 %v484, %v480
        %v614 = vpack.c.bf16 %v492, %v488
        %v615 = vpack.c.bf16 %v494, %v490
        %v616 = vpack.c.bf16 %v502, %v498
        %v617 = vpack.c.bf16 %v504, %v500
        %v618 = vpack.c.bf16 %v512, %v508
        %v619 = vpack.c.bf16 %v514, %v510
        %v620 = vpack.c.bf16 %v522, %v518
        %v621 = vpack.c.bf16 %v524, %v520
        %v622 = vpack.c.bf16 %v532, %v528
        %v623 = vpack.c.bf16 %v534, %v530
        %v624 = vpack.c.bf16 %v542, %v538
        %v625 = vpack.c.bf16 %v544, %v540
        %v626 = vpack.c.bf16 %v552, %v548
        %v627 = vpack.c.bf16 %v554, %v550
        %v628 = vpack.c.bf16 %v562, %v558
        %v629 = vpack.c.bf16 %v564, %v560
        %v630 = vpack.c.bf16 %v572, %v568
        %v631 = vpack.c.bf16 %v574, %v570
        %v632 = vpack.c.bf16 %v582, %v578
        %v633 = vpack.c.bf16 %v584, %v580
        %v634 = vpack.c.bf16 %v592, %v588
        %v635 = vpack.c.bf16 %v594, %v590
        %v636 = vpack.c.bf16 %v602, %v598
        %v637 = vpack.c.bf16 %v604, %v600
        %v670 = vunpack.c.l.b16 %v606
        %v671 = vunpack.c.l.b16 %v607
        %v672 = vunpack.c.h.b16 %v606
        %v673 = vunpack.c.h.b16 %v607
        %v674 = vunpack.c.l.b16 %v608
        %v675 = vunpack.c.l.b16 %v609
        %v676 = vunpack.c.h.b16 %v608
        %v677 = vunpack.c.h.b16 %v609
        %v678 = vunpack.c.l.b16 %v610
        %v679 = vunpack.c.l.b16 %v611
        %v680 = vunpack.c.h.b16 %v610
        %v681 = vunpack.c.h.b16 %v611
        %v682 = vunpack.c.l.b16 %v612
        %v683 = vunpack.c.l.b16 %v613
        %v684 = vunpack.c.h.b16 %v612
        %v685 = vunpack.c.h.b16 %v613
        %v686 = vunpack.c.l.b16 %v614
        %v687 = vunpack.c.l.b16 %v615
        %v688 = vunpack.c.h.b16 %v614
        %v689 = vunpack.c.h.b16 %v615
        %v690 = vunpack.c.l.b16 %v616
        %v691 = vunpack.c.l.b16 %v617
        %v692 = vunpack.c.h.b16 %v616
        %v693 = vunpack.c.h.b16 %v617
        %v694 = vunpack.c.l.b16 %v618
        %v695 = vunpack.c.l.b16 %v619
        %v696 = vunpack.c.h.b16 %v618
        %v697 = vunpack.c.h.b16 %v619
        %v698 = vunpack.c.l.b16 %v620
        %v699 = vunpack.c.l.b16 %v621
        %v700 = vunpack.c.h.b16 %v620
        %v701 = vunpack.c.h.b16 %v621
        %v702 = vunpack.c.l.b16 %v622
        %v703 = vunpack.c.l.b16 %v623
        %v704 = vunpack.c.h.b16 %v622
        %v705 = vunpack.c.h.b16 %v623
        %v706 = vunpack.c.l.b16 %v624
        %v707 = vunpack.c.l.b16 %v625
        %v708 = vunpack.c.h.b16 %v624
        %v709 = vunpack.c.h.b16 %v625
        %v710 = vunpack.c.l.b16 %v626
        %v711 = vunpack.c.l.b16 %v627
        %v712 = vunpack.c.h.b16 %v626
        %v713 = vunpack.c.h.b16 %v627
        %v714 = vunpack.c.l.b16 %v628
        %v715 = vunpack.c.l.b16 %v629
        %v716 = vunpack.c.h.b16 %v628
        %v717 = vunpack.c.h.b16 %v629
        %v718 = vunpack.c.l.b16 %v630
        %v719 = vunpack.c.l.b16 %v631
        %v720 = vunpack.c.h.b16 %v630
        %v721 = vunpack.c.h.b16 %v631
        %v722 = vunpack.c.l.b16 %v632
        %v723 = vunpack.c.l.b16 %v633
        %v724 = vunpack.c.h.b16 %v632
        %v725 = vunpack.c.h.b16 %v633
        %v726 = vunpack.c.l.b16 %v634
        %v727 = vunpack.c.l.b16 %v635
        %v728 = vunpack.c.h.b16 %v634
        %v729 = vunpack.c.h.b16 %v635
        %v730 = vunpack.c.l.b16 %v636
        %v731 = vunpack.c.l.b16 %v637
        %v732 = vunpack.c.h.b16 %v636
        %v733 = vunpack.c.h.b16 %v637
        %v734 = vpack.c.b16 %v671, %v670
        %v735 = vpack.c.b16 %v673, %v672
        %v736 = vpack.c.b16 %v675, %v674
        %v737 = vpack.c.b16 %v677, %v676
        %v738 = vpack.c.b16 %v679, %v678
        %v739 = vpack.c.b16 %v681, %v680
        %v740 = vpack.c.b16 %v683, %v682
        %v741 = vpack.c.b16 %v685, %v684
        %v742 = vpack.c.b16 %v687, %v686
        %v743 = vpack.c.b16 %v689, %v688
        %v744 = vpack.c.b16 %v691, %v690
        %v745 = vpack.c.b16 %v693, %v692
        %v746 = vpack.c.b16 %v695, %v694
        %v747 = vpack.c.b16 %v697, %v696
        %v748 = vpack.c.b16 %v699, %v698
        %v749 = vpack.c.b16 %v701, %v700
        %v750 = vpack.c.b16 %v703, %v702
        %v751 = vpack.c.b16 %v705, %v704
        %v752 = vpack.c.b16 %v707, %v706
        %v753 = vpack.c.b16 %v709, %v708
        %v754 = vpack.c.b16 %v711, %v710
        %v755 = vpack.c.b16 %v713, %v712
        %v756 = vpack.c.b16 %v715, %v714
        %v757 = vpack.c.b16 %v717, %v716
        %v758 = vpack.c.b16 %v719, %v718
        %v759 = vpack.c.b16 %v721, %v720
        %v760 = vpack.c.b16 %v723, %v722
        %v761 = vpack.c.b16 %v725, %v724
        %v762 = vpack.c.b16 %v727, %v726
        %v763 = vpack.c.b16 %v729, %v728
        %v764 = vpack.c.b16 %v731, %v730
        %v765 = vpack.c.b16 %v733, %v732
        %798 = vst [vmem:[%s181] sm:$0xff] %v734
        %799 = vst [vmem:[%s181 + $0x8] sm:$0xff] %v735
        %800 = vst [vmem:[%s181 + $0x10] sm:$0xff] %v736
        %801 = vst [vmem:[%s181 + $0x18] sm:$0xff] %v737
        %802 = vst [vmem:[%s181 + $0x20] sm:$0xff] %v738
        %803 = vst [vmem:[%s181 + $0x28] sm:$0xff] %v739
        %804 = vst [vmem:[%s181 + $0x30] sm:$0xff] %v740
        %805 = vst [vmem:[%s181 + $0x38] sm:$0xff] %v741
        %806 = vst [vmem:[%s181 + $0x40] sm:$0xff] %v742
        %807 = vst [vmem:[%s181 + $0x48] sm:$0xff] %v743
        %808 = vst [vmem:[%s181 + $0x50] sm:$0xff] %v744
        %809 = vst [vmem:[%s181 + $0x58] sm:$0xff] %v745
        %810 = vst [vmem:[%s181 + $0x60] sm:$0xff] %v746
        %811 = vst [vmem:[%s181 + $0x68] sm:$0xff] %v747
        %812 = vst [vmem:[%s181 + $0x70] sm:$0xff] %v748
        %813 = vst [vmem:[%s181 + $0x78] sm:$0xff] %v749
        %814 = vst [vmem:[%s181 + $0x80] sm:$0xff] %v750
        %815 = vst [vmem:[%s181 + $0x88] sm:$0xff] %v751
        %816 = vst [vmem:[%s181 + $0x90] sm:$0xff] %v752
        %817 = vst [vmem:[%s181 + $0x98] sm:$0xff] %v753
        %818 = vst [vmem:[%s181 + $0xa0] sm:$0xff] %v754
        %819 = vst [vmem:[%s181 + $0xa8] sm:$0xff] %v755
        %820 = vst [vmem:[%s181 + $0xb0] sm:$0xff] %v756
        %821 = vst [vmem:[%s181 + $0xb8] sm:$0xff] %v757
        %822 = vst [vmem:[%s181 + $0xc0] sm:$0xff] %v758
        %823 = vst [vmem:[%s181 + $0xc8] sm:$0xff] %v759
        %824 = vst [vmem:[%s181 + $0xd0] sm:$0xff] %v760
        %825 = vst [vmem:[%s181 + $0xd8] sm:$0xff] %v761
        %826 = vst [vmem:[%s181 + $0xe0] sm:$0xff] %v762
        %827 = vst [vmem:[%s181 + $0xe8] sm:$0xff] %v763
        %828 = vst [vmem:[%s181 + $0xf0] sm:$0xff] %v764
        %829 = vst [vmem:[%s181 + $0xf8] sm:$0xff] %v765
        %s830 = sand.u32 %s80, 1
        %s831 = scalar_lea.sflag [#allocation6], %s830
        %s832 = sand.u32 %s80, 1
        %s833 = smul.addr %s832, 256
        %s834 = scalar_lea.vmem [#allocation9], %s833
        // Predicated region
        $region37: #{tpu_custom_call.1} parent=27 // pred_check
          %p835 = pneg %p90
        $region38: #{tpu_custom_call.1} parent=27 // pred_check_branch
          %837 = sbr.rel (%p835) target = $region40
        $region39: #{tpu_custom_call.1} parent=27 // pred_region
          %s838 = smul.u32 32, %s25
          %s840 = ssub.s32 4096, 4096
          %841 = vsyncadd %s831, %s840
          %s842 = smul.addr %s838, 2
          %s843 = smul.addr %s842, 64
          %s844 = scalar_lea.hbm %s3, %s843
          %s845 = sshll.u32 %s834, 4
          %s846 = int_to_ptr.vmem [resolvable:$true] %s845
          %851 = dma.vmem_to_hbm [thread:$0]  %s846, 4096, %s844, %s831, 128, 128, 8
        $region40: #{tpu_custom_call.1} parent=27 // pred_fallthru
          _
      $region28: #{tpu_custom_call.1} parent=5 // pred_fallthru
        _
      %p852 = scmp.le.s32.totalorder 2, %s20
      // Predicated region
      $region41: #{tpu_custom_call.1} parent=5 // pred_check
        %p853 = pneg %p852
      $region42: #{tpu_custom_call.1} parent=5 // pred_check_branch
        %855 = sbr.rel (%p853) target = $region44
      $region43: #{tpu_custom_call.1} parent=5 // pred_region
        %s856 = ssub.s32 %s20, 2
        // Predicated region
        $region45: #{tpu_custom_call.1} parent=43 // pred_check
          %p857 = pneg %p96
        $region46: #{tpu_custom_call.1} parent=43 // pred_check_branch
          %859 = sbr.rel (%p857) target = $region48
        $region47: #{tpu_custom_call.1} parent=43 // pred_region
          %s860 = sand.u32 %s81, 1
          %s861 = scalar_lea.sflag [#allocation6], %s860
          %s862 = sand.u32 %s81, 1
          %s863 = smul.addr %s862, 256
          %s864 = scalar_lea.vmem [#allocation9], %s863
          %865 = dma.done %s861, 4096
        $region48: #{tpu_custom_call.1} parent=43 // pred_fallthru
          _
      $region44: #{tpu_custom_call.1} parent=5 // pred_fallthru
        _
    $region6: #{tpu_custom_call.1} parent=1 // loop_footer
      %s24 = sadd.s32 1, %s20
    $region7: #{tpu_custom_call.1} parent=1 // loop_footer_branch
      %19 = sbr.rel target = $region3
    $region8: #{tpu_custom_call.1} parent=1 // loop_exit
      _
    %866 = vsyncpa [#allocation5], 1
    %s867 = scalar_lea.sflag [#allocation5], 1
    %868 = vsyncpa %s867, 1
    %869 = vsyncpa [#allocation8], 1
    %870 = vsyncpa [#allocation6], 1
    %s871 = scalar_lea.sflag [#allocation6], 1
    %872 = vsyncpa %s871, 1

</llo_original>
